<compile_context>
chip_gen: v6e
topology: v6e:2x2x1
jax: 0.10.0
libtpu: 0.0.40
codegen_flags: <defaults>
</compile_context>

<pallas_src>
import functools

import numpy as np
import jax
import jax.numpy as jnp
from jax.experimental import pallas as pl
from jax.experimental.pallas import tpu as pltpu


def _voxelize_kernel(pts_ref, key_ref, *, pc_low, inv_vsize, gsize):
    """pts_ref: (4, TS, 128) block, rows = (batch, x, y, z).

    Writes, per point (sublane, lane), the lexicographic voxel key
      ((b*GX + x)*GY + y)*GZ + z   (int32; -1 if out of range / padding).
    """
    gx, gy, gz = gsize
    b = pts_ref[0]                          # (TS, 128) f32
    x = pts_ref[1]
    y = pts_ref[2]
    z = pts_ref[3]

    cx = (x - pc_low[0]) * inv_vsize[0]
    cy = (y - pc_low[1]) * inv_vsize[1]
    cz = (z - pc_low[2]) * inv_vsize[2]

    m = ((cx >= 0) & (cx < gx) &
         (cy >= 0) & (cy < gy) &
         (cz >= 0) & (cz < gz))

    # torch does .long() (trunc); for in-range (>=0) coords floor == trunc.
    xi = jnp.floor(cx).astype(jnp.int32)
    yi = jnp.floor(cy).astype(jnp.int32)
    zi = jnp.floor(cz).astype(jnp.int32)
    bi = b.astype(jnp.int32)

    # TODO(synk): int32 key overflows if batch*GX*GY*GZ >= 2**31 (torch uses int64).
    key = ((bi * gx + xi) * gy + yi) * gz + zi
    key_ref[...] = jnp.where(m, key, -1)


def _device_forward(points, *, pc_low, inv_vsize, gsize, ts_max=512):
    """Everything with static shapes, run under one jit on device."""
    N = points.shape[0]
    gx, gy, gz = gsize

    # ---- voxel-key kernel (Pallas) -------------------------------------
    chunks = pl.cdiv(N, 128)
    chunks = ((chunks + 7) // 8) * 8            # sublane multiple
    ts = min(ts_max, chunks)                    # ts is a multiple of 8
    chunks = ((chunks + ts - 1) // ts) * ts     # whole number of grid steps
    npad = chunks * 128

    sentinel = pc_low[0] - 1.0                  # guaranteed out of x-range
    pts4 = jnp.full((4, npad), sentinel, jnp.float32)
    pts4 = pts4.at[:, :N].set(points[:, :4].astype(jnp.float32).T)
    pts4 = pts4.reshape(4, chunks, 128)

    kernel = functools.partial(_voxelize_kernel, pc_low=pc_low,
                               inv_vsize=inv_vsize, gsize=gsize)
    keys = pl.pallas_call(
        kernel,
        out_shape=jax.ShapeDtypeStruct((chunks, 128), jnp.int32),
        grid=(chunks // ts,),
        in_specs=[pl.BlockSpec((4, ts, 128), lambda i: (0, i, 0))],
        out_specs=pl.BlockSpec((ts, 128), lambda i: (i, 0)),
        compiler_params=pltpu.CompilerParams(
            dimension_semantics=("parallel",)),
    )(pts4)
    keys = keys.reshape(npad)[:N]

    mask = keys >= 0
    m_count = jnp.sum(mask.astype(jnp.int32))

    # ---- fixed-capacity compaction (valid points first, order kept) ----
    ord_c = jnp.argsort(jnp.logical_not(mask), stable=True)
    pts_c = points[ord_c]                       # first m_count rows are valid
    keys_c = keys[ord_c]

    # ---- fixed-capacity unique over voxel keys -------------------------
    big = jnp.int32(2 ** 31 - 1)
    keys_s = jnp.where(keys_c >= 0, keys_c, big)
    ord_k = jnp.argsort(keys_s)
    sk = keys_s[ord_k]
    valid_s = sk != big
    boundary = jnp.concatenate([jnp.ones((1,), jnp.bool_), sk[1:] != sk[:-1]])
    rank = jnp.cumsum(boundary.astype(jnp.int32)) - 1
    u_count = jnp.sum((boundary & valid_s).astype(jnp.int32))

    # inverse index per compacted point (original relative order)
    inv_c = jnp.zeros((N,), jnp.int32).at[ord_k].set(rank)

    # unique keys gathered to the front (index N => dropped)
    scatter_idx = jnp.where(boundary & valid_s, rank, N)
    unq_keys = jnp.zeros((N,), jnp.int32).at[scatter_idx].set(sk, mode='drop')

    # decode lexicographic key back to (b, z, y, x) == unq[:, [0, 3, 2, 1]]
    zc = unq_keys % gz
    t = unq_keys // gz
    yc = t % gy
    t = t // gy
    xc = t % gx
    bc = t // gx
    unq = jnp.stack([bc, zc, yc, xc], axis=1).astype(jnp.int32)

    return pts_c[:, 1:], inv_c, unq, m_count, u_count


class VoxelNetPallas:
    """Pallas port of det3d VoxelNet (dynamic voxelization)."""

    def __init__(self, voxel_size, pc_range):
        self.voxel_size = np.asarray(voxel_size, np.float64)
        self.pc_range = np.asarray(pc_range, np.float64)
        grid_size = np.round(
            (self.pc_range[3:] - self.pc_range[:3]) / self.voxel_size
        ).astype(np.int64)
        self.grid_size = grid_size
        self._fwd = jax.jit(functools.partial(
            _device_forward,
            pc_low=tuple(float(v) for v in self.pc_range[:3]),
            inv_vsize=tuple(float(1.0 / v) for v in self.voxel_size),
            gsize=tuple(int(v) for v in grid_size),
        ))

    def __call__(self, points):
        # points: (N, D) float32, columns = [batch_id, x, y, z, feats...]
        points = jnp.asarray(points, jnp.float32)
        feats, inv_c, unq, m_count, u_count = self._fwd(points)
        # TODO(synk): torch returns dynamically sized tensors; the final trim
        # to the data-dependent point/voxel counts needs two host scalars.
        m = int(m_count)
        u = int(u_count)
        return (feats[:m], unq[:u], inv_c[:m],
                jnp.asarray(self.grid_size[[2, 1, 0]]))


def _ref_numpy(points, voxel_size, pc_range):
    """Numpy mirror of the torch forward. Uses the same float32
    reciprocal-multiply coordinate transform as the kernel; it differs from
    the torch divide only for points lying exactly on a voxel boundary."""
    points = np.asarray(points, np.float32)
    vs = np.asarray(voxel_size, np.float64)
    pr = np.asarray(pc_range, np.float64)
    gs = np.round((pr[3:] - pr[:3]) / vs).astype(np.int64)
    inv = (1.0 / vs).astype(np.float32)
    low = pr[:3].astype(np.float32)
    coords = (points[:, 1:4] - low) * inv
    m = ((coords[:, 0] >= 0) & (coords[:, 0] < gs[0]) &
         (coords[:, 1] >= 0) & (coords[:, 1] < gs[1]) &
         (coords[:, 2] >= 0) & (coords[:, 2] < gs[2]))
    pts = points[m]
    coords = np.floor(coords[m]).astype(np.int64)
    pidx = np.concatenate([pts[:, 0:1].astype(np.int64), coords], axis=1)
    unq, inv_idx = np.unique(pidx, axis=0, return_inverse=True)
    return (pts[:, 1:], unq[:, [0, 3, 2, 1]].astype(np.int32),
            inv_idx.reshape(-1), gs[[2, 1, 0]])


if __name__ == "__main__":
    voxel_size = [0.2, 0.2, 0.2]
    pc_range = [-1.6, -1.6, -1.6, 1.6, 1.6, 1.6]   # -> grid 16 x 16 x 16

    key = jax.random.PRNGKey(0)
    kb, kx, kf = jax.random.split(key, 3)
    N, D = 200, 5
    batch_id = jax.random.randint(kb, (N, 1), 0, 2).astype(jnp.float32)
    xyz = jax.random.uniform(kx, (N, 3), jnp.float32, -2.0, 2.0)  # some out of range
    feat = jax.random.uniform(kf, (N, 1), jnp.float32)
    points = jnp.concatenate([batch_id, xyz, feat], axis=1)       # (N, 5)

    model = VoxelNetPallas(voxel_size, pc_range)
    features, unq, unq_inv, grid_zyx = model(points)
    jax.block_until_ready((features, unq, unq_inv, grid_zyx))

    # correctness check vs numpy reference of the torch forward
    f_ref, u_ref, inv_ref, g_ref = _ref_numpy(np.asarray(points), voxel_size, pc_range)
    assert np.array_equal(np.asarray(features), f_ref)
    assert np.array_equal(np.asarray(unq), u_ref)
    assert np.array_equal(np.asarray(unq_inv), inv_ref)
    assert np.array_equal(np.asarray(grid_zyx), g_ref)

    print("KERNEL_OK")
</pallas_src>

<mosaic_0001>
module attributes {stable_mosaic.version = 11 : i64} {
  func.func @_voxelize_kernel(%arg0: i32, %arg1: memref<4x8x128xf32, #tpu.memory_space<vmem>>, %arg2: memref<8x128xi32, #tpu.memory_space<vmem>>) attributes {dimension_semantics = [#tpu.dimension_semantics<parallel>], iteration_bounds = array<i64: 1>, scalar_prefetch = 0 : i64, scratch_operands = 0 : i64, tpu.core_type = #tpu.core_type<tc>, window_params = [{transform_indices = @transform_0, window_bounds = array<i64: 4, 8, 128>}, {transform_indices = @transform_1, window_bounds = array<i64: 8, 128>}]} {
    %c0 = arith.constant 0 : index
    %c0_0 = arith.constant 0 : index
    %c0_1 = arith.constant 0 : index
    %0 = vector.load %arg1[%c0, %c0_0, %c0_1] : memref<4x8x128xf32, #tpu.memory_space<vmem>>, vector<1x8x128xf32>
    %1 = vector.shape_cast %0 : vector<1x8x128xf32> to vector<8x128xf32>
    %c1 = arith.constant 1 : index
    %c0_2 = arith.constant 0 : index
    %c0_3 = arith.constant 0 : index
    %2 = vector.load %arg1[%c1, %c0_2, %c0_3] : memref<4x8x128xf32, #tpu.memory_space<vmem>>, vector<1x8x128xf32>
    %3 = vector.shape_cast %2 : vector<1x8x128xf32> to vector<8x128xf32>
    %c2 = arith.constant 2 : index
    %c0_4 = arith.constant 0 : index
    %c0_5 = arith.constant 0 : index
    %4 = vector.load %arg1[%c2, %c0_4, %c0_5] : memref<4x8x128xf32, #tpu.memory_space<vmem>>, vector<1x8x128xf32>
    %5 = vector.shape_cast %4 : vector<1x8x128xf32> to vector<8x128xf32>
    %c3 = arith.constant 3 : index
    %c0_6 = arith.constant 0 : index
    %c0_7 = arith.constant 0 : index
    %6 = vector.load %arg1[%c3, %c0_6, %c0_7] : memref<4x8x128xf32, #tpu.memory_space<vmem>>, vector<1x8x128xf32>
    %7 = vector.shape_cast %6 : vector<1x8x128xf32> to vector<8x128xf32>
    %cst = arith.constant -1.600000e+00 : f32
    %8 = vector.broadcast %cst : f32 to vector<8x128xf32>
    %9 = arith.subf %3, %8 : vector<8x128xf32>
    %cst_8 = arith.constant 5.000000e+00 : f32
    %10 = vector.broadcast %cst_8 : f32 to vector<8x128xf32>
    %11 = arith.mulf %9, %10 : vector<8x128xf32>
    %cst_9 = arith.constant -1.600000e+00 : f32
    %12 = vector.broadcast %cst_9 : f32 to vector<8x128xf32>
    %13 = arith.subf %5, %12 : vector<8x128xf32>
    %cst_10 = arith.constant 5.000000e+00 : f32
    %14 = vector.broadcast %cst_10 : f32 to vector<8x128xf32>
    %15 = arith.mulf %13, %14 : vector<8x128xf32>
    %cst_11 = arith.constant -1.600000e+00 : f32
    %16 = vector.broadcast %cst_11 : f32 to vector<8x128xf32>
    %17 = arith.subf %7, %16 : vector<8x128xf32>
    %cst_12 = arith.constant 5.000000e+00 : f32
    %18 = vector.broadcast %cst_12 : f32 to vector<8x128xf32>
    %19 = arith.mulf %17, %18 : vector<8x128xf32>
    %cst_13 = arith.constant 0.000000e+00 : f32
    %20 = vector.broadcast %cst_13 : f32 to vector<8x128xf32>
    %21 = arith.cmpf oge, %11, %20 : vector<8x128xf32>
    %cst_14 = arith.constant 1.600000e+01 : f32
    %22 = vector.broadcast %cst_14 : f32 to vector<8x128xf32>
    %23 = arith.cmpf olt, %11, %22 : vector<8x128xf32>
    %24 = arith.andi %21, %23 : vector<8x128xi1>
    %cst_15 = arith.constant 0.000000e+00 : f32
    %25 = vector.broadcast %cst_15 : f32 to vector<8x128xf32>
    %26 = arith.cmpf oge, %15, %25 : vector<8x128xf32>
    %27 = arith.andi %24, %26 : vector<8x128xi1>
    %cst_16 = arith.constant 1.600000e+01 : f32
    %28 = vector.broadcast %cst_16 : f32 to vector<8x128xf32>
    %29 = arith.cmpf olt, %15, %28 : vector<8x128xf32>
    %30 = arith.andi %27, %29 : vector<8x128xi1>
    %cst_17 = arith.constant 0.000000e+00 : f32
    %31 = vector.broadcast %cst_17 : f32 to vector<8x128xf32>
    %32 = arith.cmpf oge, %19, %31 : vector<8x128xf32>
    %33 = arith.andi %30, %32 : vector<8x128xi1>
    %cst_18 = arith.constant 1.600000e+01 : f32
    %34 = vector.broadcast %cst_18 : f32 to vector<8x128xf32>
    %35 = arith.cmpf olt, %19, %34 : vector<8x128xf32>
    %36 = arith.andi %33, %35 : vector<8x128xi1>
    %37 = math.floor %11 : vector<8x128xf32>
    %38 = arith.fptosi %37 : vector<8x128xf32> to vector<8x128xi32>
    %39 = math.floor %15 : vector<8x128xf32>
    %40 = arith.fptosi %39 : vector<8x128xf32> to vector<8x128xi32>
    %41 = math.floor %19 : vector<8x128xf32>
    %42 = arith.fptosi %41 : vector<8x128xf32> to vector<8x128xi32>
    %43 = arith.fptosi %1 : vector<8x128xf32> to vector<8x128xi32>
    %c16_i32 = arith.constant 16 : i32
    %44 = vector.broadcast %c16_i32 : i32 to vector<8x128xi32>
    %45 = arith.muli %43, %44 : vector<8x128xi32>
    %46 = arith.addi %45, %38 : vector<8x128xi32>
    %c16_i32_19 = arith.constant 16 : i32
    %47 = vector.broadcast %c16_i32_19 : i32 to vector<8x128xi32>
    %48 = arith.muli %46, %47 : vector<8x128xi32>
    %49 = arith.addi %48, %40 : vector<8x128xi32>
    %c16_i32_20 = arith.constant 16 : i32
    %50 = vector.broadcast %c16_i32_20 : i32 to vector<8x128xi32>
    %51 = arith.muli %49, %50 : vector<8x128xi32>
    %52 = arith.addi %51, %42 : vector<8x128xi32>
    %c-1_i32 = arith.constant -1 : i32
    %53 = vector.broadcast %c-1_i32 : i32 to vector<8x128xi32>
    %54 = arith.select %36, %52, %53 : vector<8x128xi1>, vector<8x128xi32>
    %c0_21 = arith.constant 0 : index
    %c0_22 = arith.constant 0 : index
    %55 = vector.load %arg2[%c0_21, %c0_22] : memref<8x128xi32, #tpu.memory_space<vmem>>, vector<8x128xi32>
    tpu.vector_store %arg2[%c0_21, %c0_22], %54 {strides = array<i32>} : memref<8x128xi32, #tpu.memory_space<vmem>>, vector<8x128xi32>,
    return
  }
  func.func @transform_0(%arg0: i32) -> (i32, i32, i32) {
    %c0_i32 = arith.constant 0 : i32
    %c0_i32_0 = arith.constant 0 : i32
    %c0_i32_1 = arith.constant 0 : i32
    return %c0_i32, %arg0, %c0_i32_0 : i32, i32, i32
  }
  func.func @transform_1(%arg0: i32) -> (i32, i32) {
    %c0_i32 = arith.constant 0 : i32
    %c0_i32_0 = arith.constant 0 : i32
    return %arg0, %c0_i32 : i32, i32
  }
}

</mosaic_0001>

<llo_original>
// kernel: _device_forward.1
$region0: #{_device_forward.1}
  #allocation0 [shape = 'u32[]', space=smem, size = 0x4, offset = 0x4, fixed_abs, tag = 'smem constant byte address 0x4 - core index']
  #allocation1 [shape = 'u32[144,128]{1,0:T(1,128)}', space=vmem, size = 0x12000, scoped, tag = 'internal scratch']
  %s0 = inlined_call_operand.vmem [shape: f32[4,8,128], index: 0, kind: input, shape index: {}]
  %s1 = inlined_call_operand.vmem [shape: s32[8,128], index: 1, kind: output, shape index: {}]
  %s2 = sld [smem:[#allocation0]]
  $region14: #{_device_forward.1} parent=0
    _
  %s4 = ssub.s32 1, %s2
  %s5 = scalar_select 0, %s4, %s2
  // Predicated region
  $region2: #{_device_forward.1} parent=0 // pred_check
    _
  $region3: #{_device_forward.1} parent=0 // pred_check_branch
    %7 = sbr.rel (0) target = $region5
  $region4: #{_device_forward.1} parent=0 // pred_region
    _
  $region5: #{_device_forward.1} parent=0 // pred_fallthru
    _
  %v8 = vld [vmem:[%s0] sm:$0xff]
  %s9 = scalar_lea.vmem %s0, 8
  %v10 = vld [vmem:[%s9] sm:$0xff]
  %s11 = scalar_lea.vmem %s0, 16
  %v12 = vld [vmem:[%s11] sm:$0xff]
  %s13 = scalar_lea.vmem %s0, 24
  %v14 = vld [vmem:[%s13] sm:$0xff]
  %v15 = vsub.f32 %v10, -1.6
  %v16 = vmul.f32 %v15, 5.0
  %v17 = vsub.f32 %v12, -1.6
  %v18 = vmul.f32 %v17, 5.0
  %v19 = vsub.f32 %v14, -1.6
  %v20 = vmul.f32 %v19, 5.0
  %vm21 = vcmp.ge.f32.partialorder %v16, 0.0
  %vm22 = vcmp.lt.f32.partialorder %v16, 16.0
  %vm23 = vmand %vm21, %vm22
  %vm24 = vcmp.ge.f32.partialorder %v18, 0.0
  %vm25 = vmand %vm23, %vm24
  %vm26 = vcmp.lt.f32.partialorder %v18, 16.0
  %vm27 = vmand %vm25, %vm26
  %vm28 = vcmp.ge.f32.partialorder %v20, 0.0
  %vm29 = vmand %vm27, %vm28
  %vm30 = vcmp.lt.f32.partialorder %v20, 16.0
  %vm31 = vmand %vm29, %vm30
  %v32 = vfloor.f32 %v16
  %v33 = vcvt.f32.s32.to.zero.pseudo %v32
  %v34 = vfloor.f32 %v18
  %v35 = vcvt.f32.s32.to.zero.pseudo %v34
  %v36 = vfloor.f32 %v20
  %v37 = vcvt.f32.s32.to.zero.pseudo %v36
  %v38 = vcvt.f32.s32.to.zero.pseudo %v8
  %v39 = vmul.u32 %v38, 16
  %v40 = vadd.s32 %v39, %v33
  %v41 = vmul.u32 %v40, 16
  %v42 = vadd.s32 %v41, %v35
  %v43 = vmul.u32 %v42, 16
  %v44 = vadd.s32 %v43, %v37
  %v45 = vsel %vm31, %v44, 4294967295
  %46 = vst [vmem:[%s1] sm:$0xff] %v45
  // Predicated region
  $region6: #{_device_forward.1} parent=0 // pred_check
    _
  $region7: #{_device_forward.1} parent=0 // pred_check_branch
    %48 = sbr.rel (0) target = $region9
  $region8: #{_device_forward.1} parent=0 // pred_region
    _
  $region9: #{_device_forward.1} parent=0 // pred_fallthru
    _
  // Predicated region
  $region10: #{_device_forward.1} parent=0 // pred_check
    _
  $region11: #{_device_forward.1} parent=0 // pred_check_branch
    %50 = sbr.rel (0) target = $region13
  $region12: #{_device_forward.1} parent=0 // pred_region
    _
  $region13: #{_device_forward.1} parent=0 // pred_fallthru
    _

</llo_original>
